<compile_context>
chip_gen: v7x
topology: tpu7x:2x2x1
jax: 0.10.0
libtpu: 0.0.40
codegen_flags: <defaults>
</compile_context>

<pallas_src>
import math

import jax
import jax.numpy as jnp
from jax.experimental import pallas as pl
from jax.experimental.pallas import tpu as pltpu


def _sinusoidal_kernel(x_ref, freqs_ref, o_ref):
    # x_ref:     (TB, 1)        f32  current batch tile of timesteps
    # freqs_ref: (1, half_dim)  f32  grid-resident frequency table
    # o_ref:     (TB, dim)           output tile
    arg = x_ref[...] * freqs_ref[...]                 # (TB, half_dim), broadcast
    emb = jnp.concatenate([jnp.sin(arg), jnp.cos(arg)], axis=-1)  # (TB, dim)
    o_ref[...] = emb.astype(o_ref.dtype)              # one full-width store


def _round_up(n, m):
    return ((n + m - 1) // m) * m


def sinusoidal_pos_emb(x, dim, theta=10000, *, block_rows=512,
                       out_dtype=jnp.float32):
    """x: (B,) timesteps -> (B, dim) = concat(sin(x*f), cos(x*f), axis=-1)."""
    assert dim % 2 == 0 and dim >= 4, "dim must be even and >= 4"
    half_dim = dim // 2
    b = x.shape[0]

    # Compile-time frequency table (identical formula to the PyTorch module).
    scale = math.log(theta) / (half_dim - 1)
    freqs = jnp.exp(
        jnp.arange(half_dim, dtype=jnp.float32) * -scale
    ).reshape(1, half_dim)

    # Row tile: multiple of 8 (f32 sublane tile), capped at block_rows.
    tb = min(block_rows, _round_up(b, 8))
    b_pad = _round_up(b, tb)
    x2d = x.astype(jnp.float32).reshape(b, 1)
    if b_pad != b:
        x2d = jnp.pad(x2d, ((0, b_pad - b), (0, 0)))  # padded rows sliced off

    out = pl.pallas_call(
        _sinusoidal_kernel,
        out_shape=jax.ShapeDtypeStruct((b_pad, dim), out_dtype),
        grid_spec=pltpu.PrefetchScalarGridSpec(
            num_scalar_prefetch=0,
            grid=(b_pad // tb,),
            in_specs=[
                pl.BlockSpec((tb, 1), lambda i: (i, 0)),        # timesteps tile
                pl.BlockSpec((1, half_dim), lambda i: (0, 0)),  # resident freqs
            ],
            out_specs=pl.BlockSpec((tb, dim), lambda i: (i, 0)),
        ),
        compiler_params=pltpu.CompilerParams(
            dimension_semantics=("parallel",),   # megacore-shard batch tiles
        ),
        cost_estimate=pl.CostEstimate(
            flops=b_pad * half_dim,                 # the x * freq multiply
            transcendentals=b_pad * dim,            # sin + cos
            bytes_accessed=b_pad * 4 + half_dim * 4
            + b_pad * dim * jnp.dtype(out_dtype).itemsize,
        ),
    )(x2d, freqs)
    return out[:b]


def _reference(x, dim, theta=10000):
    half_dim = dim // 2
    emb = math.log(theta) / (half_dim - 1)
    emb = jnp.exp(jnp.arange(half_dim, dtype=jnp.float32) * -emb)
    emb = x[:, None] * emb[None, :]
    return jnp.concatenate((jnp.sin(emb), jnp.cos(emb)), axis=-1)


if __name__ == "__main__":
    key = jax.random.PRNGKey(0)
    B, DIM = 40, 128
    # Timesteps like a diffusion schedule would produce.
    x = jax.random.uniform(key, (B,), dtype=jnp.float32, minval=0.0, maxval=1000.0)

    # Small block_rows to exercise the batch grid + tail padding in the demo.
    out = sinusoidal_pos_emb(x, DIM, block_rows=16)
    out = jax.block_until_ready(out)

    ref = _reference(x, DIM)
    assert out.shape == (B, DIM)
    assert jnp.allclose(out, ref, atol=1e-5, rtol=1e-5), (
        f"max abs err {jnp.max(jnp.abs(out - ref))}"
    )
    print("KERNEL_OK")
</pallas_src>

<mosaic_0001>
module attributes {stable_mosaic.version = 11 : i64} {
  func.func @_sinusoidal_kernel(%arg0: i32, %arg1: memref<16x1xf32, #tpu.memory_space<vmem>>, %arg2: memref<1x64xf32, #tpu.memory_space<vmem>>, %arg3: memref<16x128xf32, #tpu.memory_space<vmem>>) attributes {dimension_semantics = [#tpu.dimension_semantics<parallel>], iteration_bounds = array<i64: 3>, scalar_prefetch = 0 : i64, scratch_operands = 0 : i64, tpu.core_type = #tpu.core_type<tc>, window_params = [{transform_indices = @transform_0, window_bounds = array<i64: 16, 1>}, {pipeline_mode = #tpu.pipeline_mode<synchronous>, transform_indices = @transform_1, window_bounds = array<i64: 1, 64>}, {transform_indices = @transform_2, window_bounds = array<i64: 16, 128>}]} {
    %c0 = arith.constant 0 : index
    %c0_0 = arith.constant 0 : index
    %0 = vector.load %arg1[%c0, %c0_0] : memref<16x1xf32, #tpu.memory_space<vmem>>, vector<16x1xf32>
    %c0_1 = arith.constant 0 : index
    %c0_2 = arith.constant 0 : index
    %1 = vector.load %arg2[%c0_1, %c0_2] : memref<1x64xf32, #tpu.memory_space<vmem>>, vector<1x64xf32>
    %2 = vector.broadcast %0 : vector<16x1xf32> to vector<16x64xf32>
    %3 = vector.broadcast %1 : vector<1x64xf32> to vector<16x64xf32>
    %4 = arith.mulf %2, %3 : vector<16x64xf32>
    %5 = math.sin %4 : vector<16x64xf32>
    %6 = math.cos %4 : vector<16x64xf32>
    %7 = tpu.concatenate %5, %6 in 1 : vector<16x64xf32>, vector<16x64xf32> -> vector<16x128xf32>
    %c0_3 = arith.constant 0 : index
    %c0_4 = arith.constant 0 : index
    %8 = vector.load %arg3[%c0_3, %c0_4] : memref<16x128xf32, #tpu.memory_space<vmem>>, vector<16x128xf32>
    tpu.vector_store %arg3[%c0_3, %c0_4], %7 {strides = array<i32>} : memref<16x128xf32, #tpu.memory_space<vmem>>, vector<16x128xf32>,
    return
  }
  func.func @transform_0(%arg0: i32) -> (i32, i32) {
    %c0_i32 = arith.constant 0 : i32
    %c0_i32_0 = arith.constant 0 : i32
    return %arg0, %c0_i32 : i32, i32
  }
  func.func @transform_1(%arg0: i32) -> (i32, i32) {
    %c0_i32 = arith.constant 0 : i32
    %c0_i32_0 = arith.constant 0 : i32
    %c0_i32_1 = arith.constant 0 : i32
    return %c0_i32, %c0_i32_0 : i32, i32
  }
  func.func @transform_2(%arg0: i32) -> (i32, i32) {
    %c0_i32 = arith.constant 0 : i32
    %c0_i32_0 = arith.constant 0 : i32
    return %arg0, %c0_i32 : i32, i32
  }
}

</mosaic_0001>

<llo_original>
// kernel: tpu_custom_call.1
$region0: #{tpu_custom_call.1}
  #allocation0 [shape = 'u32[]', space=smem, size = 0x4, offset = 0x4, fixed_abs, tag = 'smem constant byte address 0x4 - core index']
  #allocation1 [shape = 'u32[144,128]{1,0:T(1,128)}', space=vmem, size = 0x12000, scoped, tag = 'internal scratch']
  %s0 = inlined_call_operand.vmem [shape: f32[48,1], index: 0, kind: input, shape index: {}]
  %s1 = inlined_call_operand.vmem [shape: f32[1,64], index: 1, kind: input, shape index: {}]
  %s2 = inlined_call_operand.hbm [shape: f32[48,128], index: 2, kind: output, shape index: {}]
  %s3 = sld [smem:[#allocation0]]
  $region41: #{tpu_custom_call.1} parent=0
    _
  %s5 = ssub.s32 1, %s3
  %s6 = scalar_select 0, %s5, %s3
  $region1: #{tpu_custom_call.1} parent=0
    #allocation2 [shape = 'u8[16384]{0}', space=vmem, size = 0x4000, scoped, tag = 'output window, operand 0']
    #allocation3 [shape = 's32[2]{0}', space=sflag, size = 0x8, scoped, tag = 'scoped memory for tpu_custom_call.1']
    %7 = vsyncpa [#allocation3], 0
    %s8 = scalar_lea.sflag [#allocation3], 1
    %9 = vsyncpa %s8, 0
    loop: start=0, step=1, limit=5
    $region2: #{tpu_custom_call.1} parent=1 // loop_pre_header
      _
    $region3: #{tpu_custom_call.1} parent=1 // loop_header
      %s11 = sphi 0, %s15
      %p12 = scmp.ge.s32.totalorder %s11, 5
      %s21 = sphi 0, %s23
      %s24 = sphi 0, %s21
      %s25 = sphi 0, %s24
      %s41 = sphi 0, %s25
      %s45 = sphi 0, %s45
      %s47 = sphi 0, %s45
      %s48 = sphi 0, %s47
      %s62 = sphi 0, %s48
      %s68 = sphi 0, %s70
      %s71 = sphi 0, %s68
      %s72 = sphi 0, %s71
      %s88 = sphi 0, %s72
    $region4: #{tpu_custom_call.1} parent=1 // loop_header_branch
      %14 = sbr.rel (%p12) target = $region8
    $region5: #{tpu_custom_call.1} parent=1 // loop_body
      %s16 = ssub.s32 %s11, 1
      %s17 = ssub.s32 %s11, 2
      %s18 = sadd.s32 %s11, 1
      %s19 = ssub.s32 %s11, %s18
      %p20 = scmp.eq.s32.totalorder %s19, 0
      %s22 = sadd.s32 %s21, 1
      %s23 = scalar_select %p20, %s21, %s22
      %p26 = pneg %p20
      %p27 = scmp.eq.s32.totalorder %s11, 2
      %p28 = por %p26, %p27
      %p29 = scmp.ne.s32.totalorder %s21, %s24
      %p30 = scmp.eq.s32.totalorder %s11, 0
      %p31 = por %p29, %p30
      %p32 = scmp.ne.s32.totalorder %s21, %s24
      %p33 = scmp.eq.s32.totalorder %s16, 2
      %p34 = por %p32, %p33
      %p35 = scmp.ne.s32.totalorder %s24, %s25
      %p36 = scmp.eq.s32.totalorder %s16, 0
      %p37 = por %p35, %p36
      %p38 = scmp.ne.s32.totalorder %s24, %s25
      %p39 = scmp.eq.s32.totalorder %s17, 2
      %p40 = por %p38, %p39
      %p42 = scmp.ne.s32.totalorder %s25, %s41
      %p43 = scmp.eq.s32.totalorder %s17, 0
      %p44 = por %p42, %p43
      %s46 = sadd.s32 %s45, 1
      %p49 = scmp.eq.s32.totalorder %s11, 2
      %p50 = scmp.ne.s32.totalorder %s45, %s47
      %p51 = scmp.eq.s32.totalorder %s11, 0
      %p52 = por %p50, %p51
      %p53 = scmp.ne.s32.totalorder %s45, %s47
      %p54 = scmp.eq.s32.totalorder %s16, 2
      %p55 = por %p53, %p54
      %p56 = scmp.ne.s32.totalorder %s47, %s48
      %p57 = scmp.eq.s32.totalorder %s16, 0
      %p58 = por %p56, %p57
      %p59 = scmp.ne.s32.totalorder %s47, %s48
      %p60 = scmp.eq.s32.totalorder %s17, 2
      %p61 = por %p59, %p60
      %p63 = scmp.ne.s32.totalorder %s48, %s62
      %p64 = scmp.eq.s32.totalorder %s17, 0
      %p65 = por %p63, %p64
      %s66 = ssub.s32 %s11, %s18
      %p67 = scmp.eq.s32.totalorder %s66, 0
      %s69 = sadd.s32 %s68, 1
      %s70 = scalar_select %p67, %s68, %s69
      %p73 = pneg %p67
      %p74 = scmp.eq.s32.totalorder %s11, 2
      %p75 = por %p73, %p74
      %p76 = scmp.ne.s32.totalorder %s68, %s71
      %p77 = scmp.eq.s32.totalorder %s11, 0
      %p78 = por %p76, %p77
      %p79 = scmp.ne.s32.totalorder %s68, %s71
      %p80 = scmp.eq.s32.totalorder %s16, 2
      %p81 = por %p79, %p80
      %p82 = scmp.ne.s32.totalorder %s71, %s72
      %p83 = scmp.eq.s32.totalorder %s16, 0
      %p84 = por %p82, %p83
      %p85 = scmp.ne.s32.totalorder %s71, %s72
      %p86 = scmp.eq.s32.totalorder %s17, 2
      %p87 = por %p85, %p86
      %p89 = scmp.ne.s32.totalorder %s72, %s88
      %p90 = scmp.eq.s32.totalorder %s17, 0
      %p91 = por %p89, %p90
      %p92 = scmp.le.s32.totalorder 1, %s11
      %p93 = scmp.lt.s32.totalorder %s11, 4
      %p94 = pnand %p92, %p93
      %p95 = pneg %p94
      // Predicated region
      $region9: #{tpu_custom_call.1} parent=5 // pred_check
        _
      $region10: #{tpu_custom_call.1} parent=5 // pred_check_branch
        %97 = sbr.rel (%p94) target = $region12
      $region11: #{tpu_custom_call.1} parent=5 // pred_region
        %s98 = ssub.s32 %s11, 1
        // Predicated region
        $region13: #{tpu_custom_call.1} parent=11 // pred_check
          %p99 = pneg %p58
        $region14: #{tpu_custom_call.1} parent=11 // pred_check_branch
          %101 = sbr.rel (%p99) target = $region16
        $region15: #{tpu_custom_call.1} parent=11 // pred_region
          _
        $region16: #{tpu_custom_call.1} parent=11 // pred_fallthru
          _
      $region12: #{tpu_custom_call.1} parent=5 // pred_fallthru
        _
      %p102 = scmp.lt.s32.totalorder %s11, 3
      // Predicated region
      $region17: #{tpu_custom_call.1} parent=5 // pred_check
        %p103 = pneg %p102
      $region18: #{tpu_custom_call.1} parent=5 // pred_check_branch
        %105 = sbr.rel (%p103) target = $region20
      $region19: #{tpu_custom_call.1} parent=5 // pred_region
        // Predicated region
        $region21: #{tpu_custom_call.1} parent=19 // pred_check
          %p106 = pneg %p31
        $region22: #{tpu_custom_call.1} parent=19 // pred_check_branch
          %108 = sbr.rel (%p106) target = $region24
        $region23: #{tpu_custom_call.1} parent=19 // pred_region
          %s109 = smul.u32 2, %s11
          %p110 = scmp.lt.s32.totalorder %s109, 5
          %s111 = scalar_select %p110, %s109, 5
          %s112 = smul.addr %s111, 8
          %s113 = scalar_lea.vmem %s0, %s112
          %s114 = smul.u32 2, %s11
        $region24: #{tpu_custom_call.1} parent=19 // pred_fallthru
          _
      $region20: #{tpu_custom_call.1} parent=5 // pred_fallthru
        _
      %p115 = scmp.le.s32.totalorder 1, %s11
      %p116 = scmp.lt.s32.totalorder %s11, 4
      %p117 = pnand %p115, %p116
      %p118 = pneg %p117
      // Predicated region
      $region25: #{tpu_custom_call.1} parent=5 // pred_check
        _
      $region26: #{tpu_custom_call.1} parent=5 // pred_check_branch
        %120 = sbr.rel (%p117) target = $region28
      $region27: #{tpu_custom_call.1} parent=5 // pred_region
        %s121 = ssub.s32 %s11, 1
        %s122 = smul.u32 2, %s16
        %p123 = scmp.lt.s32.totalorder %s122, 5
        %s124 = scalar_select %p123, %s122, 5
        %s125 = smul.addr %s124, 8
        %s126 = scalar_lea.vmem %s0, %s125
        %p127 = pneg %p37
        %p128 = pneg %p34
        %p129 = pneg %p58
        %p130 = pneg %p55
        %p131 = pneg %p84
        %p132 = pneg %p81
        %s133 = sand.u32 %s71, 1
        %s134 = scalar_lea.sflag [#allocation3], %s133
        %s135 = sand.u32 %s71, 1
        %s136 = smul.addr %s135, 16
        %s137 = scalar_lea.vmem [#allocation2], %s136
        %s138 = smul.u32 2, %s16
        %p139 = scmp.lt.s32.totalorder %s138, 5
        %s140 = scalar_select %p139, %s138, 5
        %s141 = smul.addr %s140, 8
        %s142 = scalar_lea.vmem %s0, %s141
        %s143 = smul.u32 2, %s16
        %s144 = smul.u32 2, %s16
        %v145 = vld [vmem:[%s142] sm:$0xff]
        %v146 = vld [vmem:[%s142 + $0x8] sm:$0xff]
        %v147 = vld [vmem:[%s1] sm:$0x1]
        %149 = vset.pattern.permute.xlu0 0
        %150 = vperm.xlu0 %149, %v145
        %v151 = vpop.permute.xlu0 %150
        %154 = vset.pattern.permute.xlu0 0
        %155 = vperm.xlu0 %154, %v146
        %v156 = vpop.permute.xlu0 %155
        %v159 = vlaneseq
        %v160 = vshrl.u32 %v159, 7
        %v161 = vsub.s32 0, %v160
        %v162 = vrot.slane %v147, %v161
        %v164 = vmul.f32 %v151, %v162
        %v165 = vmul.f32 %v156, %v162
        %v166 = vand.u32 2147483647, %v164
        %vm167 = vcmp.le.f32.partialorder %v166, 0.7853982
        %vm168 = vcmp.lt.s32.totalorder %v164, 0
        %v169 = vand.u32 %v164, 2139095040
        %v170 = vshrl.u32 %v169, 23
        %v171 = vsub.s32 %v170, 127
        %v172 = vand.u32 2147483647, %v164
        %v173 = vand.u32 %v172, 8388607
        %v174 = vor.u32 %v173, 8388608
        %v175 = vsub.s32 0, %v174
        %v176 = vadd.s32 %v171, 1
        %vm177 = vcmp.gt.s32.totalorder %v176, 0
        %v178 = vsel %vm177, %v176, 0
        %v179 = vshrl.u32 %v178, 5
        %v180 = vand.u32 %v178, 31
        %v181 = vsub.s32 32, %v180
        %v182 = vshrl.u32 683565275, %v181
        %v183 = vshll.u32 683565275, %v180
        %v184 = vshrl.u32 2475754826, %v181
        %v185 = vor.u32 %v183, %v184
        %v186 = vshll.u32 2475754826, %v180
        %v187 = vshrl.u32 2131351028, %v181
        %v188 = vor.u32 %v186, %v187
        %v189 = vshll.u32 2131351028, %v180
        %v190 = vshrl.u32 2102212464, %v181
        %v191 = vor.u32 %v189, %v190
        %v192 = vshll.u32 2102212464, %v180
        %v193 = vshrl.u32 920167782, %v181
        %v194 = vor.u32 %v192, %v193
        %v195 = vshll.u32 920167782, %v180
        %v196 = vshrl.u32 1326507024, %v181
        %v197 = vor.u32 %v195, %v196
        %vm198 = vcmp.lt.s32.totalorder %v179, 1
        %vm199 = vcmp.lt.s32.totalorder %v179, 2
        %vm200 = vcmp.lt.s32.totalorder %v179, 3
        %vm201 = vcmp.lt.s32.totalorder %v179, 4
        %v202 = vsel %vm198, %v182, %v185
        %v203 = vsel %vm201, %v191, 2102212464
        %v204 = vsel %vm200, %v188, %v203
        %v205 = vsel %vm199, %v202, %v204
        %v206 = vsel %vm198, %v185, %v188
        %v207 = vsel %vm201, %v194, 920167782
        %v208 = vsel %vm200, %v191, %v207
        %v209 = vsel %vm199, %v206, %v208
        %v210 = vsel %vm198, %v188, %v191
        %v211 = vsel %vm201, %v197, 1326507024
        %v212 = vsel %vm200, %v194, %v211
        %v213 = vsel %vm199, %v210, %v212
        %v214 = vshll.u32 %v174, 8
        %v215 = vmul.u32.u64.compose %v214, %v213
        %v216 = vextract.low.u32 %v215
        %v217 = vextract.high.u32 %v215
        %v218 = vmul.u32.u64.compose %v214, %v209
        %v219 = vextract.low.u32 %v218
        %v220 = vextract.high.u32 %v218
        %v221 = vmul.u32 %v214, %v205
        %v222 = vadd.s32 %v217, %v219
        %vm223 = vc.u32 %v217, %v219
        %v224 = vadd.s32 %v220, 1
        %v225 = vsel %vm223, %v224, %v220
        %v226 = vadd.s32 %v221, %v225
        %v227 = vadd.s32 %v226, 536870912
        %v228 = vshrl.u32 %v227, 30
        %v229 = vshll.u32 %v228, 30
        %v230 = vsub.s32 %v226, %v229
        %vm231 = vcmp.lt.s32.totalorder %v230, 0
        %v232 = vsub.s32 0, %v230
        %v233 = vsel %vm231, %v232, %v230
        %v234 = vclz %v233
        %v235 = vsub.s32 %v234, 2
        %vm236 = vcmp.gt.s32.totalorder 0, %v235
        %v237 = vsel %vm236, 0, %v235
        %v238 = vsub.s32 32, %v237
        %v239 = vshll.u32 %v230, %v237
        %v240 = vshrl.u32 %v222, %v238
        %v241 = vor.u32 %v239, %v240
        %v242 = vsub.s32 4294967266, %v237
        %v243 = vadd.s32 %v242, 127
        %v244 = vshll.u32 %v243, 23
        %v245 = vor.u32 4788187, %v244
        %v246 = vand.u32 2147483647, %v245
        %v248 = vcvt.s32.f32 %v241
        %v249 = vmul.f32 %v248, %v246
        %v250 = vxor.u32 %v249, 2147483648
        %v251 = vsel %vm168, %v250, %v249
        %v252 = vsub.s32 4, %v228
        %v253 = vsel %vm168, %v252, %v228
        %v254 = vsel %vm167, %v164, %v251
        %v255 = vsel %vm167, 0, %v253
        %v256 = vcosq.f32.pop %v254
        %v257 = vsinq.f32.pop %v254
        %vm258 = vweird.f32 %v164
        %v259 = vadd.s32 %v255, 3
        %v260 = vand.u32 %v259, 3
        %vm261 = vcmp.lt.s32.totalorder %v260, 2
        %vm262 = vcmp.eq.s32.totalorder %v260, 0
        %v263 = vxor.u32 %v257, 2147483648
        %v264 = vsel %vm262, %v256, %v263
        %vm265 = vcmp.eq.s32.totalorder %v260, 2
        %v266 = vxor.u32 %v256, 2147483648
        %v267 = vsel %vm265, %v266, %v257
        %v268 = vsel %vm261, %v264, %v267
        %v269 = vsel %vm258, nan, %v268
        %v270 = vand.u32 2147483647, %v165
        %vm271 = vcmp.le.f32.partialorder %v270, 0.7853982
        %vm272 = vcmp.lt.s32.totalorder %v165, 0
        %v273 = vand.u32 %v165, 2139095040
        %v274 = vshrl.u32 %v273, 23
        %v275 = vsub.s32 %v274, 127
        %v276 = vand.u32 2147483647, %v165
        %v277 = vand.u32 %v276, 8388607
        %v278 = vor.u32 %v277, 8388608
        %v279 = vsub.s32 0, %v278
        %v280 = vadd.s32 %v275, 1
        %vm281 = vcmp.gt.s32.totalorder %v280, 0
        %v282 = vsel %vm281, %v280, 0
        %v283 = vshrl.u32 %v282, 5
        %v284 = vand.u32 %v282, 31
        %v285 = vsub.s32 32, %v284
        %v286 = vshrl.u32 683565275, %v285
        %v287 = vshll.u32 683565275, %v284
        %v288 = vshrl.u32 2475754826, %v285
        %v289 = vor.u32 %v287, %v288
        %v290 = vshll.u32 2475754826, %v284
        %v291 = vshrl.u32 2131351028, %v285
        %v292 = vor.u32 %v290, %v291
        %v293 = vshll.u32 2131351028, %v284
        %v294 = vshrl.u32 2102212464, %v285
        %v295 = vor.u32 %v293, %v294
        %v296 = vshll.u32 2102212464, %v284
        %v297 = vshrl.u32 920167782, %v285
        %v298 = vor.u32 %v296, %v297
        %v299 = vshll.u32 920167782, %v284
        %v300 = vshrl.u32 1326507024, %v285
        %v301 = vor.u32 %v299, %v300
        %vm302 = vcmp.lt.s32.totalorder %v283, 1
        %vm303 = vcmp.lt.s32.totalorder %v283, 2
        %vm304 = vcmp.lt.s32.totalorder %v283, 3
        %vm305 = vcmp.lt.s32.totalorder %v283, 4
        %v306 = vsel %vm302, %v286, %v289
        %v307 = vsel %vm305, %v295, 2102212464
        %v308 = vsel %vm304, %v292, %v307
        %v309 = vsel %vm303, %v306, %v308
        %v310 = vsel %vm302, %v289, %v292
        %v311 = vsel %vm305, %v298, 920167782
        %v312 = vsel %vm304, %v295, %v311
        %v313 = vsel %vm303, %v310, %v312
        %v314 = vsel %vm302, %v292, %v295
        %v315 = vsel %vm305, %v301, 1326507024
        %v316 = vsel %vm304, %v298, %v315
        %v317 = vsel %vm303, %v314, %v316
        %v318 = vshll.u32 %v278, 8
        %v319 = vmul.u32.u64.compose %v318, %v317
        %v320 = vextract.low.u32 %v319
        %v321 = vextract.high.u32 %v319
        %v322 = vmul.u32.u64.compose %v318, %v313
        %v323 = vextract.low.u32 %v322
        %v324 = vextract.high.u32 %v322
        %v325 = vmul.u32 %v318, %v309
        %v326 = vadd.s32 %v321, %v323
        %vm327 = vc.u32 %v321, %v323
        %v328 = vadd.s32 %v324, 1
        %v329 = vsel %vm327, %v328, %v324
        %v330 = vadd.s32 %v325, %v329
        %v331 = vadd.s32 %v330, 536870912
        %v332 = vshrl.u32 %v331, 30
        %v333 = vshll.u32 %v332, 30
        %v334 = vsub.s32 %v330, %v333
        %vm335 = vcmp.lt.s32.totalorder %v334, 0
        %v336 = vsub.s32 0, %v334
        %v337 = vsel %vm335, %v336, %v334
        %v338 = vclz %v337
        %v339 = vsub.s32 %v338, 2
        %vm340 = vcmp.gt.s32.totalorder 0, %v339
        %v341 = vsel %vm340, 0, %v339
        %v342 = vsub.s32 32, %v341
        %v343 = vshll.u32 %v334, %v341
        %v344 = vshrl.u32 %v326, %v342
        %v345 = vor.u32 %v343, %v344
        %v346 = vsub.s32 4294967266, %v341
        %v347 = vadd.s32 %v346, 127
        %v348 = vshll.u32 %v347, 23
        %v349 = vor.u32 4788187, %v348
        %v350 = vand.u32 2147483647, %v349
        %v352 = vcvt.s32.f32 %v345
        %v353 = vmul.f32 %v352, %v350
        %v354 = vxor.u32 %v353, 2147483648
        %v355 = vsel %vm272, %v354, %v353
        %v356 = vsub.s32 4, %v332
        %v357 = vsel %vm272, %v356, %v332
        %v358 = vsel %vm271, %v165, %v355
        %v359 = vsel %vm271, 0, %v357
        %v360 = vcosq.f32.pop %v358
        %v361 = vsinq.f32.pop %v358
        %vm362 = vweird.f32 %v165
        %v363 = vadd.s32 %v359, 3
        %v364 = vand.u32 %v363, 3
        %vm365 = vcmp.lt.s32.totalorder %v364, 2
        %vm366 = vcmp.eq.s32.totalorder %v364, 0
        %v367 = vxor.u32 %v361, 2147483648
        %v368 = vsel %vm366, %v360, %v367
        %vm369 = vcmp.eq.s32.totalorder %v364, 2
        %v370 = vxor.u32 %v360, 2147483648
        %v371 = vsel %vm369, %v370, %v361
        %v372 = vsel %vm365, %v368, %v371
        %v373 = vsel %vm362, nan, %v372
        %v374 = vand.u32 2147483647, %v164
        %vm375 = vcmp.le.f32.partialorder %v374, 0.7853982
        %vm376 = vcmp.lt.s32.totalorder %v164, 0
        %v377 = vand.u32 %v164, 2139095040
        %v378 = vshrl.u32 %v377, 23
        %v379 = vsub.s32 %v378, 127
        %v380 = vand.u32 2147483647, %v164
        %v381 = vand.u32 %v380, 8388607
        %v382 = vor.u32 %v381, 8388608
        %v383 = vsub.s32 0, %v382
        %v384 = vadd.s32 %v379, 1
        %vm385 = vcmp.gt.s32.totalorder %v384, 0
        %v386 = vsel %vm385, %v384, 0
        %v387 = vshrl.u32 %v386, 5
        %v388 = vand.u32 %v386, 31
        %v389 = vsub.s32 32, %v388
        %v390 = vshrl.u32 683565275, %v389
        %v391 = vshll.u32 683565275, %v388
        %v392 = vshrl.u32 2475754826, %v389
        %v393 = vor.u32 %v391, %v392
        %v394 = vshll.u32 2475754826, %v388
        %v395 = vshrl.u32 2131351028, %v389
        %v396 = vor.u32 %v394, %v395
        %v397 = vshll.u32 2131351028, %v388
        %v398 = vshrl.u32 2102212464, %v389
        %v399 = vor.u32 %v397, %v398
        %v400 = vshll.u32 2102212464, %v388
        %v401 = vshrl.u32 920167782, %v389
        %v402 = vor.u32 %v400, %v401
        %v403 = vshll.u32 920167782, %v388
        %v404 = vshrl.u32 1326507024, %v389
        %v405 = vor.u32 %v403, %v404
        %vm406 = vcmp.lt.s32.totalorder %v387, 1
        %vm407 = vcmp.lt.s32.totalorder %v387, 2
        %vm408 = vcmp.lt.s32.totalorder %v387, 3
        %vm409 = vcmp.lt.s32.totalorder %v387, 4
        %v410 = vsel %vm406, %v390, %v393
        %v411 = vsel %vm409, %v399, 2102212464
        %v412 = vsel %vm408, %v396, %v411
        %v413 = vsel %vm407, %v410, %v412
        %v414 = vsel %vm406, %v393, %v396
        %v415 = vsel %vm409, %v402, 920167782
        %v416 = vsel %vm408, %v399, %v415
        %v417 = vsel %vm407, %v414, %v416
        %v418 = vsel %vm406, %v396, %v399
        %v419 = vsel %vm409, %v405, 1326507024
        %v420 = vsel %vm408, %v402, %v419
        %v421 = vsel %vm407, %v418, %v420
        %v422 = vshll.u32 %v382, 8
        %v423 = vmul.u32.u64.compose %v422, %v421
        %v424 = vextract.low.u32 %v423
        %v425 = vextract.high.u32 %v423
        %v426 = vmul.u32.u64.compose %v422, %v417
        %v427 = vextract.low.u32 %v426
        %v428 = vextract.high.u32 %v426
        %v429 = vmul.u32 %v422, %v413
        %v430 = vadd.s32 %v425, %v427
        %vm431 = vc.u32 %v425, %v427
        %v432 = vadd.s32 %v428, 1
        %v433 = vsel %vm431, %v432, %v428
        %v434 = vadd.s32 %v429, %v433
        %v435 = vadd.s32 %v434, 536870912
        %v436 = vshrl.u32 %v435, 30
        %v437 = vshll.u32 %v436, 30
        %v438 = vsub.s32 %v434, %v437
        %vm439 = vcmp.lt.s32.totalorder %v438, 0
        %v440 = vsub.s32 0, %v438
        %v441 = vsel %vm439, %v440, %v438
        %v442 = vclz %v441
        %v443 = vsub.s32 %v442, 2
        %vm444 = vcmp.gt.s32.totalorder 0, %v443
        %v445 = vsel %vm444, 0, %v443
        %v446 = vsub.s32 32, %v445
        %v447 = vshll.u32 %v438, %v445
        %v448 = vshrl.u32 %v430, %v446
        %v449 = vor.u32 %v447, %v448
        %v450 = vsub.s32 4294967266, %v445
        %v451 = vadd.s32 %v450, 127
        %v452 = vshll.u32 %v451, 23
        %v453 = vor.u32 4788187, %v452
        %v454 = vand.u32 2147483647, %v453
        %v456 = vcvt.s32.f32 %v449
        %v457 = vmul.f32 %v456, %v454
        %v458 = vxor.u32 %v457, 2147483648
        %v459 = vsel %vm376, %v458, %v457
        %v460 = vsub.s32 4, %v436
        %v461 = vsel %vm376, %v460, %v436
        %v462 = vsel %vm375, %v164, %v459
        %v463 = vsel %vm375, 0, %v461
        %v464 = vcosq.f32.pop %v462
        %v465 = vsinq.f32.pop %v462
        %vm466 = vweird.f32 %v164
        %v467 = vand.u32 %v463, 3
        %vm468 = vcmp.lt.s32.totalorder %v467, 2
        %vm469 = vcmp.eq.s32.totalorder %v467, 0
        %v470 = vxor.u32 %v465, 2147483648
        %v471 = vsel %vm469, %v464, %v470
        %vm472 = vcmp.eq.s32.totalorder %v467, 2
        %v473 = vxor.u32 %v464, 2147483648
        %v474 = vsel %vm472, %v473, %v465
        %v475 = vsel %vm468, %v471, %v474
        %v476 = vsel %vm466, nan, %v475
        %v477 = vand.u32 2147483647, %v165
        %vm478 = vcmp.le.f32.partialorder %v477, 0.7853982
        %vm479 = vcmp.lt.s32.totalorder %v165, 0
        %v480 = vand.u32 %v165, 2139095040
        %v481 = vshrl.u32 %v480, 23
        %v482 = vsub.s32 %v481, 127
        %v483 = vand.u32 2147483647, %v165
        %v484 = vand.u32 %v483, 8388607
        %v485 = vor.u32 %v484, 8388608
        %v486 = vsub.s32 0, %v485
        %v487 = vadd.s32 %v482, 1
        %vm488 = vcmp.gt.s32.totalorder %v487, 0
        %v489 = vsel %vm488, %v487, 0
        %v490 = vshrl.u32 %v489, 5
        %v491 = vand.u32 %v489, 31
        %v492 = vsub.s32 32, %v491
        %v493 = vshrl.u32 683565275, %v492
        %v494 = vshll.u32 683565275, %v491
        %v495 = vshrl.u32 2475754826, %v492
        %v496 = vor.u32 %v494, %v495
        %v497 = vshll.u32 2475754826, %v491
        %v498 = vshrl.u32 2131351028, %v492
        %v499 = vor.u32 %v497, %v498
        %v500 = vshll.u32 2131351028, %v491
        %v501 = vshrl.u32 2102212464, %v492
        %v502 = vor.u32 %v500, %v501
        %v503 = vshll.u32 2102212464, %v491
        %v504 = vshrl.u32 920167782, %v492
        %v505 = vor.u32 %v503, %v504
        %v506 = vshll.u32 920167782, %v491
        %v507 = vshrl.u32 1326507024, %v492
        %v508 = vor.u32 %v506, %v507
        %vm509 = vcmp.lt.s32.totalorder %v490, 1
        %vm510 = vcmp.lt.s32.totalorder %v490, 2
        %vm511 = vcmp.lt.s32.totalorder %v490, 3
        %vm512 = vcmp.lt.s32.totalorder %v490, 4
        %v513 = vsel %vm509, %v493, %v496
        %v514 = vsel %vm512, %v502, 2102212464
        %v515 = vsel %vm511, %v499, %v514
        %v516 = vsel %vm510, %v513, %v515
        %v517 = vsel %vm509, %v496, %v499
        %v518 = vsel %vm512, %v505, 920167782
        %v519 = vsel %vm511, %v502, %v518
        %v520 = vsel %vm510, %v517, %v519
        %v521 = vsel %vm509, %v499, %v502
        %v522 = vsel %vm512, %v508, 1326507024
        %v523 = vsel %vm511, %v505, %v522
        %v524 = vsel %vm510, %v521, %v523
        %v525 = vshll.u32 %v485, 8
        %v526 = vmul.u32.u64.compose %v525, %v524
        %v527 = vextract.low.u32 %v526
        %v528 = vextract.high.u32 %v526
        %v529 = vmul.u32.u64.compose %v525, %v520
        %v530 = vextract.low.u32 %v529
        %v531 = vextract.high.u32 %v529
        %v532 = vmul.u32 %v525, %v516
        %v533 = vadd.s32 %v528, %v530
        %vm534 = vc.u32 %v528, %v530
        %v535 = vadd.s32 %v531, 1
        %v536 = vsel %vm534, %v535, %v531
        %v537 = vadd.s32 %v532, %v536
        %v538 = vadd.s32 %v537, 536870912
        %v539 = vshrl.u32 %v538, 30
        %v540 = vshll.u32 %v539, 30
        %v541 = vsub.s32 %v537, %v540
        %vm542 = vcmp.lt.s32.totalorder %v541, 0
        %v543 = vsub.s32 0, %v541
        %v544 = vsel %vm542, %v543, %v541
        %v545 = vclz %v544
        %v546 = vsub.s32 %v545, 2
        %vm547 = vcmp.gt.s32.totalorder 0, %v546
        %v548 = vsel %vm547, 0, %v546
        %v549 = vsub.s32 32, %v548
        %v550 = vshll.u32 %v541, %v548
        %v551 = vshrl.u32 %v533, %v549
        %v552 = vor.u32 %v550, %v551
        %v553 = vsub.s32 4294967266, %v548
        %v554 = vadd.s32 %v553, 127
        %v555 = vshll.u32 %v554, 23
        %v556 = vor.u32 4788187, %v555
        %v557 = vand.u32 2147483647, %v556
        %v559 = vcvt.s32.f32 %v552
        %v560 = vmul.f32 %v559, %v557
        %v561 = vxor.u32 %v560, 2147483648
        %v562 = vsel %vm479, %v561, %v560
        %v563 = vsub.s32 4, %v539
        %v564 = vsel %vm479, %v563, %v539
        %v565 = vsel %vm478, %v165, %v562
        %v566 = vsel %vm478, 0, %v564
        %v567 = vcosq.f32.pop %v565
        %v568 = vsinq.f32.pop %v565
        %vm569 = vweird.f32 %v165
        %v570 = vand.u32 %v566, 3
        %vm571 = vcmp.lt.s32.totalorder %v570, 2
        %vm572 = vcmp.eq.s32.totalorder %v570, 0
        %v573 = vxor.u32 %v568, 2147483648
        %v574 = vsel %vm572, %v567, %v573
        %vm575 = vcmp.eq.s32.totalorder %v570, 2
        %v576 = vxor.u32 %v567, 2147483648
        %v577 = vsel %vm575, %v576, %v568
        %v578 = vsel %vm571, %v574, %v577
        %v579 = vsel %vm569, nan, %v578
        %582 = vrot.lane.b32.xlu0 %v476, 64
        %v583 = vpop.permute.xlu0 %582
        %584 = vrot.lane.b32.xlu0 %v579, 64
        %v585 = vpop.permute.xlu0 %584
        %vm588 = vcmask 523264
        %v589 = vsel %vm588, %v269, %v583
        %v590 = vsel %vm588, %v373, %v585
        %591 = vst [vmem:[%s137] sm:$0xff] %v589
        %592 = vst [vmem:[%s137 + $0x8] sm:$0xff] %v590
        %s593 = sand.u32 %s71, 1
        %s594 = scalar_lea.sflag [#allocation3], %s593
        %s595 = sand.u32 %s71, 1
        %s596 = smul.addr %s595, 16
        %s597 = scalar_lea.vmem [#allocation2], %s596
        // Predicated region
        $region29: #{tpu_custom_call.1} parent=27 // pred_check
          %p598 = pneg %p81
        $region30: #{tpu_custom_call.1} parent=27 // pred_check_branch
          %600 = sbr.rel (%p598) target = $region32
        $region31: #{tpu_custom_call.1} parent=27 // pred_region
          %s601 = smul.u32 2, %s16
          %s603 = ssub.s32 256, 256
          %604 = vsyncadd %s594, %s603
          %s605 = smul.addr %s601, 128
          %s606 = scalar_lea.hbm %s2, %s605
          %s607 = sshll.u32 %s597, 4
          %s608 = int_to_ptr.vmem [resolvable:$true] %s607
          %613 = dma.vmem_to_hbm [thread:$0]  %s608, 256, %s606, %s594, 128, 128, 8
        $region32: #{tpu_custom_call.1} parent=27 // pred_fallthru
          _
      $region28: #{tpu_custom_call.1} parent=5 // pred_fallthru
        _
      %p614 = scmp.le.s32.totalorder 2, %s11
      // Predicated region
      $region33: #{tpu_custom_call.1} parent=5 // pred_check
        %p615 = pneg %p614
      $region34: #{tpu_custom_call.1} parent=5 // pred_check_branch
        %617 = sbr.rel (%p615) target = $region36
      $region35: #{tpu_custom_call.1} parent=5 // pred_region
        %s618 = ssub.s32 %s11, 2
        // Predicated region
        $region37: #{tpu_custom_call.1} parent=35 // pred_check
          %p619 = pneg %p87
        $region38: #{tpu_custom_call.1} parent=35 // pred_check_branch
          %621 = sbr.rel (%p619) target = $region40
        $region39: #{tpu_custom_call.1} parent=35 // pred_region
          %s622 = sand.u32 %s72, 1
          %s623 = scalar_lea.sflag [#allocation3], %s622
          %s624 = sand.u32 %s72, 1
          %s625 = smul.addr %s624, 16
          %s626 = scalar_lea.vmem [#allocation2], %s625
          %627 = dma.done %s623, 256
        $region40: #{tpu_custom_call.1} parent=35 // pred_fallthru
          _
      $region36: #{tpu_custom_call.1} parent=5 // pred_fallthru
        _
    $region6: #{tpu_custom_call.1} parent=1 // loop_footer
      %s15 = sadd.s32 1, %s11
    $region7: #{tpu_custom_call.1} parent=1 // loop_footer_branch
      %10 = sbr.rel target = $region3
    $region8: #{tpu_custom_call.1} parent=1 // loop_exit
      _
    %628 = vsyncpa [#allocation3], 1
    %s629 = scalar_lea.sflag [#allocation3], 1
    %630 = vsyncpa %s629, 1

</llo_original>
